<compile_context>
chip_gen: v6e
topology: v6e:2x2x1
jax: 0.10.0
libtpu: 0.0.40
codegen_flags: <defaults>
</compile_context>

<pallas_src>
import jax
import jax.numpy as jnp
from jax.experimental import pallas as pl
from jax.experimental.pallas import tpu as pltpu

DIM = 6
DEFAULT_TILE_B = 4096      # batch (lane) elements per grid step for large B
SMALL_B_THRESHOLD = 1024   # below this, a plain jnp.dot beats any custom call


def mlp_kernel(w_ref, xt_ref, ot_ref):
    # w_ref : (DIM, DIM) f32 in SMEM, (out, in) layout -> scalar reads only.
    # xt_ref: (DIM, tb)  f32 in VMEM, batch on the 128-lane axis.
    # ot_ref: (DIM, tb)  f32 in VMEM.
    # out[j, :] = sum_k w[j, k] * x[k, :]
    for j in range(DIM):
        acc = w_ref[j, 0] * xt_ref[0:1, :]
        for k in range(1, DIM):
            acc = acc + w_ref[j, k] * xt_ref[k:k + 1, :]
        ot_ref[j:j + 1, :] = acc.astype(ot_ref.dtype)


def fold_weights(w1, w2, w3, w4):
    """One-time parameter prep (outside the per-call path).

    torch semantics: y = x @ w1.T @ w2.T @ w3.T @ w4.T = x @ (w4 @ w3 @ w2 @ w1).T
    Returns W_fold = w4 @ w3 @ w2 @ w1 in torch (out, in) layout, so
    out[j] = sum_k W_fold[j, k] * x[k].
    """
    return w4 @ (w3 @ (w2 @ w1))


def mlp_forward_pallas(x, w_fold, *, tile_b=None):
    """x: (B, DIM) f32; w_fold: (DIM, DIM) f32 pre-folded (out, in) weight."""
    B, D = x.shape
    assert D == DIM, f"expected feature dim {DIM}, got {D}"

    if tile_b is None:
        tile_b = DEFAULT_TILE_B
    if B <= tile_b:
        tb = B  # single block spanning the whole (lane) axis -> always legal
    else:
        # Lane-dim blocks that don't span the array must be multiples of 128.
        tb = min(B, max(128, (tile_b // 128) * 128))

    xt = x.T  # (DIM, B): batch rides the lane axis (wrapper-side layout plumbing)

    ot = pl.pallas_call(
        mlp_kernel,
        out_shape=jax.ShapeDtypeStruct((DIM, B), jnp.float32),
        grid=(pl.cdiv(B, tb),),
        in_specs=[
            # 6x6 folded weight: whole array resident in SMEM, scalar reads.
            pl.BlockSpec(memory_space=pltpu.MemorySpace.SMEM),
            # Activations transposed: batch tiled along the 128-lane axis.
            pl.BlockSpec((DIM, tb), lambda i: (0, i)),
        ],
        out_specs=pl.BlockSpec((DIM, tb), lambda i: (0, i)),
        compiler_params=pltpu.CompilerParams(
            dimension_semantics=("parallel",)),
    )(w_fold, xt)

    return ot.T  # back to (B, DIM)


def mlp_forward(x, w_fold, *, tile_b=None):
    """Dispatch: tiny batches go straight to XLA (custom-call overhead dwarfs
    the ~72*B FLOPs); large batches use the lane-dense Pallas kernel."""
    if x.shape[0] < SMALL_B_THRESHOLD:
        return x @ w_fold.T
    return mlp_forward_pallas(x, w_fold, tile_b=tile_b)


def init_params(key):
    """Deterministic init mimicking torch.nn.Linear default (uniform +-1/sqrt(fan_in))."""
    ks = jax.random.split(key, 4)
    bound = 1.0 / jnp.sqrt(DIM)
    return [
        jax.random.uniform(k, (DIM, DIM), jnp.float32, minval=-bound, maxval=bound)
        for k in ks
    ]


def reference_forward(x, w1, w2, w3, w4):
    # Pure-JAX reference matching torch semantics: four chained x @ W.T.
    h = x
    for w in (w1, w2, w3, w4):
        h = h @ w.T
    return h


if __name__ == "__main__":
    key = jax.random.PRNGKey(0)
    k_x, k_x2, k_w = jax.random.split(key, 3)

    w1, w2, w3, w4 = init_params(k_w)
    # One-time weight folding (parameter prep, NOT in the per-call path).
    w_fold = fold_weights(w1, w2, w3, w4)

    # Test 1: small batch matching the original module usage.  Force the
    # Pallas path so the kernel itself is exercised (dispatch wrapper would
    # route this to jnp.dot).
    B = 8
    x = jax.random.normal(k_x, (B, DIM), dtype=jnp.float32)
    out = jax.block_until_ready(mlp_forward_pallas(x, w_fold))
    ref = reference_forward(x, w1, w2, w3, w4)
    assert out.shape == (B, DIM)
    assert jnp.allclose(out, ref, atol=1e-5, rtol=1e-5), "mismatch vs reference (B=8)"

    # Test 2: multi-step grid — exercises batch tiling on the lane axis and
    # the "parallel" grid semantics (kept small for fast compile).
    B2 = 512
    x2 = jax.random.normal(k_x2, (B2, DIM), dtype=jnp.float32)
    out2 = jax.block_until_ready(mlp_forward_pallas(x2, w_fold, tile_b=128))
    ref2 = reference_forward(x2, w1, w2, w3, w4)
    assert jnp.allclose(out2, ref2, atol=1e-5, rtol=1e-5), "mismatch vs reference (B=512)"

    # Dispatch wrapper sanity (small B -> plain jnp.dot path).
    out3 = jax.block_until_ready(mlp_forward(x, w_fold))
    assert jnp.allclose(out3, ref, atol=1e-5, rtol=1e-5)

    print("KERNEL_OK")
</pallas_src>

<mosaic_0001>
module attributes {stable_mosaic.version = 11 : i64} {
  func.func @mlp_kernel(%arg0: i32, %arg1: memref<6x6xf32, #tpu.memory_space<smem>>, %arg2: memref<6x8xf32, #tpu.memory_space<vmem>>, %arg3: memref<6x8xf32, #tpu.memory_space<vmem>>) attributes {dimension_semantics = [#tpu.dimension_semantics<parallel>], iteration_bounds = array<i64: 1>, scalar_prefetch = 0 : i64, scratch_operands = 0 : i64, tpu.core_type = #tpu.core_type<tc>, window_params = [{transform_indices = @transform_0, window_bounds = array<i64: 6, 6>}, {transform_indices = @transform_1, window_bounds = array<i64: 6, 8>}, {transform_indices = @transform_2, window_bounds = array<i64: 6, 8>}]} {
    %c0 = arith.constant 0 : index
    %c0_0 = arith.constant 0 : index
    %0 = memref.load %arg1[%c0, %c0_0] : memref<6x6xf32, #tpu.memory_space<smem>>
    %c0_1 = arith.constant 0 : index
    %c0_2 = arith.constant 0 : index
    %1 = vector.load %arg2[%c0_1, %c0_2] : memref<6x8xf32, #tpu.memory_space<vmem>>, vector<1x8xf32>
    %2 = vector.broadcast %0 : f32 to vector<1x8xf32>
    %3 = arith.mulf %2, %1 : vector<1x8xf32>
    %c0_3 = arith.constant 0 : index
    %c1 = arith.constant 1 : index
    %4 = memref.load %arg1[%c0_3, %c1] : memref<6x6xf32, #tpu.memory_space<smem>>
    %c1_4 = arith.constant 1 : index
    %c0_5 = arith.constant 0 : index
    %5 = vector.load %arg2[%c1_4, %c0_5] : memref<6x8xf32, #tpu.memory_space<vmem>>, vector<1x8xf32>
    %6 = vector.broadcast %4 : f32 to vector<1x8xf32>
    %7 = arith.mulf %6, %5 : vector<1x8xf32>
    %8 = arith.addf %3, %7 : vector<1x8xf32>
    %c0_6 = arith.constant 0 : index
    %c2 = arith.constant 2 : index
    %9 = memref.load %arg1[%c0_6, %c2] : memref<6x6xf32, #tpu.memory_space<smem>>
    %c2_7 = arith.constant 2 : index
    %c0_8 = arith.constant 0 : index
    %10 = vector.load %arg2[%c2_7, %c0_8] : memref<6x8xf32, #tpu.memory_space<vmem>>, vector<1x8xf32>
    %11 = vector.broadcast %9 : f32 to vector<1x8xf32>
    %12 = arith.mulf %11, %10 : vector<1x8xf32>
    %13 = arith.addf %8, %12 : vector<1x8xf32>
    %c0_9 = arith.constant 0 : index
    %c3 = arith.constant 3 : index
    %14 = memref.load %arg1[%c0_9, %c3] : memref<6x6xf32, #tpu.memory_space<smem>>
    %c3_10 = arith.constant 3 : index
    %c0_11 = arith.constant 0 : index
    %15 = vector.load %arg2[%c3_10, %c0_11] : memref<6x8xf32, #tpu.memory_space<vmem>>, vector<1x8xf32>
    %16 = vector.broadcast %14 : f32 to vector<1x8xf32>
    %17 = arith.mulf %16, %15 : vector<1x8xf32>
    %18 = arith.addf %13, %17 : vector<1x8xf32>
    %c0_12 = arith.constant 0 : index
    %c4 = arith.constant 4 : index
    %19 = memref.load %arg1[%c0_12, %c4] : memref<6x6xf32, #tpu.memory_space<smem>>
    %c4_13 = arith.constant 4 : index
    %c0_14 = arith.constant 0 : index
    %20 = vector.load %arg2[%c4_13, %c0_14] : memref<6x8xf32, #tpu.memory_space<vmem>>, vector<1x8xf32>
    %21 = vector.broadcast %19 : f32 to vector<1x8xf32>
    %22 = arith.mulf %21, %20 : vector<1x8xf32>
    %23 = arith.addf %18, %22 : vector<1x8xf32>
    %c0_15 = arith.constant 0 : index
    %c5 = arith.constant 5 : index
    %24 = memref.load %arg1[%c0_15, %c5] : memref<6x6xf32, #tpu.memory_space<smem>>
    %c5_16 = arith.constant 5 : index
    %c0_17 = arith.constant 0 : index
    %25 = vector.load %arg2[%c5_16, %c0_17] : memref<6x8xf32, #tpu.memory_space<vmem>>, vector<1x8xf32>
    %26 = vector.broadcast %24 : f32 to vector<1x8xf32>
    %27 = arith.mulf %26, %25 : vector<1x8xf32>
    %28 = arith.addf %23, %27 : vector<1x8xf32>
    %c0_18 = arith.constant 0 : index
    %c0_19 = arith.constant 0 : index
    %29 = vector.load %arg3[%c0_18, %c0_19] : memref<6x8xf32, #tpu.memory_space<vmem>>, vector<1x8xf32>
    tpu.vector_store %arg3[%c0_18, %c0_19], %28 {strides = array<i32>} : memref<6x8xf32, #tpu.memory_space<vmem>>, vector<1x8xf32>,
    %c1_20 = arith.constant 1 : index
    %c0_21 = arith.constant 0 : index
    %30 = memref.load %arg1[%c1_20, %c0_21] : memref<6x6xf32, #tpu.memory_space<smem>>
    %c0_22 = arith.constant 0 : index
    %c0_23 = arith.constant 0 : index
    %31 = vector.load %arg2[%c0_22, %c0_23] : memref<6x8xf32, #tpu.memory_space<vmem>>, vector<1x8xf32>
    %32 = vector.broadcast %30 : f32 to vector<1x8xf32>
    %33 = arith.mulf %32, %31 : vector<1x8xf32>
    %c1_24 = arith.constant 1 : index
    %c1_25 = arith.constant 1 : index
    %34 = memref.load %arg1[%c1_24, %c1_25] : memref<6x6xf32, #tpu.memory_space<smem>>
    %c1_26 = arith.constant 1 : index
    %c0_27 = arith.constant 0 : index
    %35 = vector.load %arg2[%c1_26, %c0_27] : memref<6x8xf32, #tpu.memory_space<vmem>>, vector<1x8xf32>
    %36 = vector.broadcast %34 : f32 to vector<1x8xf32>
    %37 = arith.mulf %36, %35 : vector<1x8xf32>
    %38 = arith.addf %33, %37 : vector<1x8xf32>
    %c1_28 = arith.constant 1 : index
    %c2_29 = arith.constant 2 : index
    %39 = memref.load %arg1[%c1_28, %c2_29] : memref<6x6xf32, #tpu.memory_space<smem>>
    %c2_30 = arith.constant 2 : index
    %c0_31 = arith.constant 0 : index
    %40 = vector.load %arg2[%c2_30, %c0_31] : memref<6x8xf32, #tpu.memory_space<vmem>>, vector<1x8xf32>
    %41 = vector.broadcast %39 : f32 to vector<1x8xf32>
    %42 = arith.mulf %41, %40 : vector<1x8xf32>
    %43 = arith.addf %38, %42 : vector<1x8xf32>
    %c1_32 = arith.constant 1 : index
    %c3_33 = arith.constant 3 : index
    %44 = memref.load %arg1[%c1_32, %c3_33] : memref<6x6xf32, #tpu.memory_space<smem>>
    %c3_34 = arith.constant 3 : index
    %c0_35 = arith.constant 0 : index
    %45 = vector.load %arg2[%c3_34, %c0_35] : memref<6x8xf32, #tpu.memory_space<vmem>>, vector<1x8xf32>
    %46 = vector.broadcast %44 : f32 to vector<1x8xf32>
    %47 = arith.mulf %46, %45 : vector<1x8xf32>
    %48 = arith.addf %43, %47 : vector<1x8xf32>
    %c1_36 = arith.constant 1 : index
    %c4_37 = arith.constant 4 : index
    %49 = memref.load %arg1[%c1_36, %c4_37] : memref<6x6xf32, #tpu.memory_space<smem>>
    %c4_38 = arith.constant 4 : index
    %c0_39 = arith.constant 0 : index
    %50 = vector.load %arg2[%c4_38, %c0_39] : memref<6x8xf32, #tpu.memory_space<vmem>>, vector<1x8xf32>
    %51 = vector.broadcast %49 : f32 to vector<1x8xf32>
    %52 = arith.mulf %51, %50 : vector<1x8xf32>
    %53 = arith.addf %48, %52 : vector<1x8xf32>
    %c1_40 = arith.constant 1 : index
    %c5_41 = arith.constant 5 : index
    %54 = memref.load %arg1[%c1_40, %c5_41] : memref<6x6xf32, #tpu.memory_space<smem>>
    %c5_42 = arith.constant 5 : index
    %c0_43 = arith.constant 0 : index
    %55 = vector.load %arg2[%c5_42, %c0_43] : memref<6x8xf32, #tpu.memory_space<vmem>>, vector<1x8xf32>
    %56 = vector.broadcast %54 : f32 to vector<1x8xf32>
    %57 = arith.mulf %56, %55 : vector<1x8xf32>
    %58 = arith.addf %53, %57 : vector<1x8xf32>
    %c1_44 = arith.constant 1 : index
    %c0_45 = arith.constant 0 : index
    %59 = vector.load %arg3[%c1_44, %c0_45] : memref<6x8xf32, #tpu.memory_space<vmem>>, vector<1x8xf32>
    tpu.vector_store %arg3[%c1_44, %c0_45], %58 {strides = array<i32>} : memref<6x8xf32, #tpu.memory_space<vmem>>, vector<1x8xf32>,
    %c2_46 = arith.constant 2 : index
    %c0_47 = arith.constant 0 : index
    %60 = memref.load %arg1[%c2_46, %c0_47] : memref<6x6xf32, #tpu.memory_space<smem>>
    %c0_48 = arith.constant 0 : index
    %c0_49 = arith.constant 0 : index
    %61 = vector.load %arg2[%c0_48, %c0_49] : memref<6x8xf32, #tpu.memory_space<vmem>>, vector<1x8xf32>
    %62 = vector.broadcast %60 : f32 to vector<1x8xf32>
    %63 = arith.mulf %62, %61 : vector<1x8xf32>
    %c2_50 = arith.constant 2 : index
    %c1_51 = arith.constant 1 : index
    %64 = memref.load %arg1[%c2_50, %c1_51] : memref<6x6xf32, #tpu.memory_space<smem>>
    %c1_52 = arith.constant 1 : index
    %c0_53 = arith.constant 0 : index
    %65 = vector.load %arg2[%c1_52, %c0_53] : memref<6x8xf32, #tpu.memory_space<vmem>>, vector<1x8xf32>
    %66 = vector.broadcast %64 : f32 to vector<1x8xf32>
    %67 = arith.mulf %66, %65 : vector<1x8xf32>
    %68 = arith.addf %63, %67 : vector<1x8xf32>
    %c2_54 = arith.constant 2 : index
    %c2_55 = arith.constant 2 : index
    %69 = memref.load %arg1[%c2_54, %c2_55] : memref<6x6xf32, #tpu.memory_space<smem>>
    %c2_56 = arith.constant 2 : index
    %c0_57 = arith.constant 0 : index
    %70 = vector.load %arg2[%c2_56, %c0_57] : memref<6x8xf32, #tpu.memory_space<vmem>>, vector<1x8xf32>
    %71 = vector.broadcast %69 : f32 to vector<1x8xf32>
    %72 = arith.mulf %71, %70 : vector<1x8xf32>
    %73 = arith.addf %68, %72 : vector<1x8xf32>
    %c2_58 = arith.constant 2 : index
    %c3_59 = arith.constant 3 : index
    %74 = memref.load %arg1[%c2_58, %c3_59] : memref<6x6xf32, #tpu.memory_space<smem>>
    %c3_60 = arith.constant 3 : index
    %c0_61 = arith.constant 0 : index
    %75 = vector.load %arg2[%c3_60, %c0_61] : memref<6x8xf32, #tpu.memory_space<vmem>>, vector<1x8xf32>
    %76 = vector.broadcast %74 : f32 to vector<1x8xf32>
    %77 = arith.mulf %76, %75 : vector<1x8xf32>
    %78 = arith.addf %73, %77 : vector<1x8xf32>
    %c2_62 = arith.constant 2 : index
    %c4_63 = arith.constant 4 : index
    %79 = memref.load %arg1[%c2_62, %c4_63] : memref<6x6xf32, #tpu.memory_space<smem>>
    %c4_64 = arith.constant 4 : index
    %c0_65 = arith.constant 0 : index
    %80 = vector.load %arg2[%c4_64, %c0_65] : memref<6x8xf32, #tpu.memory_space<vmem>>, vector<1x8xf32>
    %81 = vector.broadcast %79 : f32 to vector<1x8xf32>
    %82 = arith.mulf %81, %80 : vector<1x8xf32>
    %83 = arith.addf %78, %82 : vector<1x8xf32>
    %c2_66 = arith.constant 2 : index
    %c5_67 = arith.constant 5 : index
    %84 = memref.load %arg1[%c2_66, %c5_67] : memref<6x6xf32, #tpu.memory_space<smem>>
    %c5_68 = arith.constant 5 : index
    %c0_69 = arith.constant 0 : index
    %85 = vector.load %arg2[%c5_68, %c0_69] : memref<6x8xf32, #tpu.memory_space<vmem>>, vector<1x8xf32>
    %86 = vector.broadcast %84 : f32 to vector<1x8xf32>
    %87 = arith.mulf %86, %85 : vector<1x8xf32>
    %88 = arith.addf %83, %87 : vector<1x8xf32>
    %c2_70 = arith.constant 2 : index
    %c0_71 = arith.constant 0 : index
    %89 = vector.load %arg3[%c2_70, %c0_71] : memref<6x8xf32, #tpu.memory_space<vmem>>, vector<1x8xf32>
    tpu.vector_store %arg3[%c2_70, %c0_71], %88 {strides = array<i32>} : memref<6x8xf32, #tpu.memory_space<vmem>>, vector<1x8xf32>,
    %c3_72 = arith.constant 3 : index
    %c0_73 = arith.constant 0 : index
    %90 = memref.load %arg1[%c3_72, %c0_73] : memref<6x6xf32, #tpu.memory_space<smem>>
    %c0_74 = arith.constant 0 : index
    %c0_75 = arith.constant 0 : index
    %91 = vector.load %arg2[%c0_74, %c0_75] : memref<6x8xf32, #tpu.memory_space<vmem>>, vector<1x8xf32>
    %92 = vector.broadcast %90 : f32 to vector<1x8xf32>
    %93 = arith.mulf %92, %91 : vector<1x8xf32>
    %c3_76 = arith.constant 3 : index
    %c1_77 = arith.constant 1 : index
    %94 = memref.load %arg1[%c3_76, %c1_77] : memref<6x6xf32, #tpu.memory_space<smem>>
    %c1_78 = arith.constant 1 : index
    %c0_79 = arith.constant 0 : index
    %95 = vector.load %arg2[%c1_78, %c0_79] : memref<6x8xf32, #tpu.memory_space<vmem>>, vector<1x8xf32>
    %96 = vector.broadcast %94 : f32 to vector<1x8xf32>
    %97 = arith.mulf %96, %95 : vector<1x8xf32>
    %98 = arith.addf %93, %97 : vector<1x8xf32>
    %c3_80 = arith.constant 3 : index
    %c2_81 = arith.constant 2 : index
    %99 = memref.load %arg1[%c3_80, %c2_81] : memref<6x6xf32, #tpu.memory_space<smem>>
    %c2_82 = arith.constant 2 : index
    %c0_83 = arith.constant 0 : index
    %100 = vector.load %arg2[%c2_82, %c0_83] : memref<6x8xf32, #tpu.memory_space<vmem>>, vector<1x8xf32>
    %101 = vector.broadcast %99 : f32 to vector<1x8xf32>
    %102 = arith.mulf %101, %100 : vector<1x8xf32>
    %103 = arith.addf %98, %102 : vector<1x8xf32>
    %c3_84 = arith.constant 3 : index
    %c3_85 = arith.constant 3 : index
    %104 = memref.load %arg1[%c3_84, %c3_85] : memref<6x6xf32, #tpu.memory_space<smem>>
    %c3_86 = arith.constant 3 : index
    %c0_87 = arith.constant 0 : index
    %105 = vector.load %arg2[%c3_86, %c0_87] : memref<6x8xf32, #tpu.memory_space<vmem>>, vector<1x8xf32>
    %106 = vector.broadcast %104 : f32 to vector<1x8xf32>
    %107 = arith.mulf %106, %105 : vector<1x8xf32>
    %108 = arith.addf %103, %107 : vector<1x8xf32>
    %c3_88 = arith.constant 3 : index
    %c4_89 = arith.constant 4 : index
    %109 = memref.load %arg1[%c3_88, %c4_89] : memref<6x6xf32, #tpu.memory_space<smem>>
    %c4_90 = arith.constant 4 : index
    %c0_91 = arith.constant 0 : index
    %110 = vector.load %arg2[%c4_90, %c0_91] : memref<6x8xf32, #tpu.memory_space<vmem>>, vector<1x8xf32>
    %111 = vector.broadcast %109 : f32 to vector<1x8xf32>
    %112 = arith.mulf %111, %110 : vector<1x8xf32>
    %113 = arith.addf %108, %112 : vector<1x8xf32>
    %c3_92 = arith.constant 3 : index
    %c5_93 = arith.constant 5 : index
    %114 = memref.load %arg1[%c3_92, %c5_93] : memref<6x6xf32, #tpu.memory_space<smem>>
    %c5_94 = arith.constant 5 : index
    %c0_95 = arith.constant 0 : index
    %115 = vector.load %arg2[%c5_94, %c0_95] : memref<6x8xf32, #tpu.memory_space<vmem>>, vector<1x8xf32>
    %116 = vector.broadcast %114 : f32 to vector<1x8xf32>
    %117 = arith.mulf %116, %115 : vector<1x8xf32>
    %118 = arith.addf %113, %117 : vector<1x8xf32>
    %c3_96 = arith.constant 3 : index
    %c0_97 = arith.constant 0 : index
    %119 = vector.load %arg3[%c3_96, %c0_97] : memref<6x8xf32, #tpu.memory_space<vmem>>, vector<1x8xf32>
    tpu.vector_store %arg3[%c3_96, %c0_97], %118 {strides = array<i32>} : memref<6x8xf32, #tpu.memory_space<vmem>>, vector<1x8xf32>,
    %c4_98 = arith.constant 4 : index
    %c0_99 = arith.constant 0 : index
    %120 = memref.load %arg1[%c4_98, %c0_99] : memref<6x6xf32, #tpu.memory_space<smem>>
    %c0_100 = arith.constant 0 : index
    %c0_101 = arith.constant 0 : index
    %121 = vector.load %arg2[%c0_100, %c0_101] : memref<6x8xf32, #tpu.memory_space<vmem>>, vector<1x8xf32>
    %122 = vector.broadcast %120 : f32 to vector<1x8xf32>
    %123 = arith.mulf %122, %121 : vector<1x8xf32>
    %c4_102 = arith.constant 4 : index
    %c1_103 = arith.constant 1 : index
    %124 = memref.load %arg1[%c4_102, %c1_103] : memref<6x6xf32, #tpu.memory_space<smem>>
    %c1_104 = arith.constant 1 : index
    %c0_105 = arith.constant 0 : index
    %125 = vector.load %arg2[%c1_104, %c0_105] : memref<6x8xf32, #tpu.memory_space<vmem>>, vector<1x8xf32>
    %126 = vector.broadcast %124 : f32 to vector<1x8xf32>
    %127 = arith.mulf %126, %125 : vector<1x8xf32>
    %128 = arith.addf %123, %127 : vector<1x8xf32>
    %c4_106 = arith.constant 4 : index
    %c2_107 = arith.constant 2 : index
    %129 = memref.load %arg1[%c4_106, %c2_107] : memref<6x6xf32, #tpu.memory_space<smem>>
    %c2_108 = arith.constant 2 : index
    %c0_109 = arith.constant 0 : index
    %130 = vector.load %arg2[%c2_108, %c0_109] : memref<6x8xf32, #tpu.memory_space<vmem>>, vector<1x8xf32>
    %131 = vector.broadcast %129 : f32 to vector<1x8xf32>
    %132 = arith.mulf %131, %130 : vector<1x8xf32>
    %133 = arith.addf %128, %132 : vector<1x8xf32>
    %c4_110 = arith.constant 4 : index
    %c3_111 = arith.constant 3 : index
    %134 = memref.load %arg1[%c4_110, %c3_111] : memref<6x6xf32, #tpu.memory_space<smem>>
    %c3_112 = arith.constant 3 : index
    %c0_113 = arith.constant 0 : index
    %135 = vector.load %arg2[%c3_112, %c0_113] : memref<6x8xf32, #tpu.memory_space<vmem>>, vector<1x8xf32>
    %136 = vector.broadcast %134 : f32 to vector<1x8xf32>
    %137 = arith.mulf %136, %135 : vector<1x8xf32>
    %138 = arith.addf %133, %137 : vector<1x8xf32>
    %c4_114 = arith.constant 4 : index
    %c4_115 = arith.constant 4 : index
    %139 = memref.load %arg1[%c4_114, %c4_115] : memref<6x6xf32, #tpu.memory_space<smem>>
    %c4_116 = arith.constant 4 : index
    %c0_117 = arith.constant 0 : index
    %140 = vector.load %arg2[%c4_116, %c0_117] : memref<6x8xf32, #tpu.memory_space<vmem>>, vector<1x8xf32>
    %141 = vector.broadcast %139 : f32 to vector<1x8xf32>
    %142 = arith.mulf %141, %140 : vector<1x8xf32>
    %143 = arith.addf %138, %142 : vector<1x8xf32>
    %c4_118 = arith.constant 4 : index
    %c5_119 = arith.constant 5 : index
    %144 = memref.load %arg1[%c4_118, %c5_119] : memref<6x6xf32, #tpu.memory_space<smem>>
    %c5_120 = arith.constant 5 : index
    %c0_121 = arith.constant 0 : index
    %145 = vector.load %arg2[%c5_120, %c0_121] : memref<6x8xf32, #tpu.memory_space<vmem>>, vector<1x8xf32>
    %146 = vector.broadcast %144 : f32 to vector<1x8xf32>
    %147 = arith.mulf %146, %145 : vector<1x8xf32>
    %148 = arith.addf %143, %147 : vector<1x8xf32>
    %c4_122 = arith.constant 4 : index
    %c0_123 = arith.constant 0 : index
    %149 = vector.load %arg3[%c4_122, %c0_123] : memref<6x8xf32, #tpu.memory_space<vmem>>, vector<1x8xf32>
    tpu.vector_store %arg3[%c4_122, %c0_123], %148 {strides = array<i32>} : memref<6x8xf32, #tpu.memory_space<vmem>>, vector<1x8xf32>,
    %c5_124 = arith.constant 5 : index
    %c0_125 = arith.constant 0 : index
    %150 = memref.load %arg1[%c5_124, %c0_125] : memref<6x6xf32, #tpu.memory_space<smem>>
    %c0_126 = arith.constant 0 : index
    %c0_127 = arith.constant 0 : index
    %151 = vector.load %arg2[%c0_126, %c0_127] : memref<6x8xf32, #tpu.memory_space<vmem>>, vector<1x8xf32>
    %152 = vector.broadcast %150 : f32 to vector<1x8xf32>
    %153 = arith.mulf %152, %151 : vector<1x8xf32>
    %c5_128 = arith.constant 5 : index
    %c1_129 = arith.constant 1 : index
    %154 = memref.load %arg1[%c5_128, %c1_129] : memref<6x6xf32, #tpu.memory_space<smem>>
    %c1_130 = arith.constant 1 : index
    %c0_131 = arith.constant 0 : index
    %155 = vector.load %arg2[%c1_130, %c0_131] : memref<6x8xf32, #tpu.memory_space<vmem>>, vector<1x8xf32>
    %156 = vector.broadcast %154 : f32 to vector<1x8xf32>
    %157 = arith.mulf %156, %155 : vector<1x8xf32>
    %158 = arith.addf %153, %157 : vector<1x8xf32>
    %c5_132 = arith.constant 5 : index
    %c2_133 = arith.constant 2 : index
    %159 = memref.load %arg1[%c5_132, %c2_133] : memref<6x6xf32, #tpu.memory_space<smem>>
    %c2_134 = arith.constant 2 : index
    %c0_135 = arith.constant 0 : index
    %160 = vector.load %arg2[%c2_134, %c0_135] : memref<6x8xf32, #tpu.memory_space<vmem>>, vector<1x8xf32>
    %161 = vector.broadcast %159 : f32 to vector<1x8xf32>
    %162 = arith.mulf %161, %160 : vector<1x8xf32>
    %163 = arith.addf %158, %162 : vector<1x8xf32>
    %c5_136 = arith.constant 5 : index
    %c3_137 = arith.constant 3 : index
    %164 = memref.load %arg1[%c5_136, %c3_137] : memref<6x6xf32, #tpu.memory_space<smem>>
    %c3_138 = arith.constant 3 : index
    %c0_139 = arith.constant 0 : index
    %165 = vector.load %arg2[%c3_138, %c0_139] : memref<6x8xf32, #tpu.memory_space<vmem>>, vector<1x8xf32>
    %166 = vector.broadcast %164 : f32 to vector<1x8xf32>
    %167 = arith.mulf %166, %165 : vector<1x8xf32>
    %168 = arith.addf %163, %167 : vector<1x8xf32>
    %c5_140 = arith.constant 5 : index
    %c4_141 = arith.constant 4 : index
    %169 = memref.load %arg1[%c5_140, %c4_141] : memref<6x6xf32, #tpu.memory_space<smem>>
    %c4_142 = arith.constant 4 : index
    %c0_143 = arith.constant 0 : index
    %170 = vector.load %arg2[%c4_142, %c0_143] : memref<6x8xf32, #tpu.memory_space<vmem>>, vector<1x8xf32>
    %171 = vector.broadcast %169 : f32 to vector<1x8xf32>
    %172 = arith.mulf %171, %170 : vector<1x8xf32>
    %173 = arith.addf %168, %172 : vector<1x8xf32>
    %c5_144 = arith.constant 5 : index
    %c5_145 = arith.constant 5 : index
    %174 = memref.load %arg1[%c5_144, %c5_145] : memref<6x6xf32, #tpu.memory_space<smem>>
    %c5_146 = arith.constant 5 : index
    %c0_147 = arith.constant 0 : index
    %175 = vector.load %arg2[%c5_146, %c0_147] : memref<6x8xf32, #tpu.memory_space<vmem>>, vector<1x8xf32>
    %176 = vector.broadcast %174 : f32 to vector<1x8xf32>
    %177 = arith.mulf %176, %175 : vector<1x8xf32>
    %178 = arith.addf %173, %177 : vector<1x8xf32>
    %c5_148 = arith.constant 5 : index
    %c0_149 = arith.constant 0 : index
    %179 = vector.load %arg3[%c5_148, %c0_149] : memref<6x8xf32, #tpu.memory_space<vmem>>, vector<1x8xf32>
    tpu.vector_store %arg3[%c5_148, %c0_149], %178 {strides = array<i32>} : memref<6x8xf32, #tpu.memory_space<vmem>>, vector<1x8xf32>,
    return
  }
  func.func @transform_0(%arg0: i32) -> (i32, i32) {
    %c0_i32 = arith.constant 0 : i32
    %c0_i32_0 = arith.constant 0 : i32
    %c0_i32_1 = arith.constant 0 : i32
    return %c0_i32, %c0_i32_0 : i32, i32
  }
  func.func @transform_1(%arg0: i32) -> (i32, i32) {
    %c0_i32 = arith.constant 0 : i32
    %c0_i32_0 = arith.constant 0 : i32
    return %c0_i32, %arg0 : i32, i32
  }
  func.func @transform_2(%arg0: i32) -> (i32, i32) {
    %c0_i32 = arith.constant 0 : i32
    %c0_i32_0 = arith.constant 0 : i32
    return %c0_i32, %arg0 : i32, i32
  }
}

</mosaic_0001>

<llo_original>
// kernel: tpu_custom_call.1
$region0: #{tpu_custom_call.1}
  #allocation0 [shape = 'u32[]', space=smem, size = 0x4, offset = 0x4, fixed_abs, tag = 'smem constant byte address 0x4 - core index']
  #allocation1 [shape = 'u32[144,128]{1,0:T(1,128)}', space=vmem, size = 0x12000, scoped, tag = 'internal scratch']
  %s0 = inlined_call_operand.hbm [shape: f32[6,6], index: 0, kind: input, shape index: {}]
  %s1 = inlined_call_operand.hbm [shape: f32[6,8], index: 1, kind: input, shape index: {}]
  %s2 = inlined_call_operand.hbm [shape: f32[6,8], index: 2, kind: output, shape index: {}]
  %s3 = sld [smem:[#allocation0]]
  $region26: #{tpu_custom_call.1} parent=0
    _
  %s5 = ssub.s32 1, %s3
  %s6 = scalar_select 0, %s5, %s3
  $region1: #{tpu_custom_call.1} parent=0
    #allocation2 [shape = 'u8[4096]{0}', space=smem, size = 0x1000, scoped, tag = 'input window, operand 0, single buffered']
    #allocation3 [shape = 's32[1]{0}', space=sflag, size = 0x4, scoped, tag = 'scoped memory for tpu_custom_call.1']
    #allocation4 [shape = 's32[1]{0}', space=sflag, size = 0x4, scoped, tag = 'scoped memory for tpu_custom_call.1']
    #allocation5 [shape = 's32[1]{0}', space=sflag, size = 0x4, scoped, tag = 'scoped memory for tpu_custom_call.1']
    #allocation6 [shape = 'u8[4096]{0}', space=vmem, size = 0x1000, scoped, tag = 'input window, operand 1, single buffered']
    #allocation7 [shape = 'u8[4096]{0}', space=vmem, size = 0x1000, scoped, tag = 'output window, operand 0, single buffered']
    %7 = vsyncpa [#allocation5], 0
    %8 = vsyncpa [#allocation3], 0
    %9 = vsyncpa [#allocation4], 0
    // Predicated region
    $region2: #{tpu_custom_call.1} parent=1 // pred_check
      _
    $region3: #{tpu_custom_call.1} parent=1 // pred_check_branch
      %11 = sbr.rel (0) target = $region5
    $region4: #{tpu_custom_call.1} parent=1 // pred_region
      %s13 = ssub.s32 128, 128
      %14 = vsyncadd [#allocation5], %s13
      %17 = dma.hbm_to_smem %s0, 128, [#allocation2], [#allocation5]
    $region5: #{tpu_custom_call.1} parent=1 // pred_fallthru
      _
    // Predicated region
    $region6: #{tpu_custom_call.1} parent=1 // pred_check
      _
    $region7: #{tpu_custom_call.1} parent=1 // pred_check_branch
      %19 = sbr.rel (0) target = $region9
    $region8: #{tpu_custom_call.1} parent=1 // pred_region
      %s21 = ssub.s32 128, 128
      %22 = vsyncadd [#allocation3], %s21
      %s24 = sshll.u32 [#allocation6], 4
      %s25 = int_to_ptr.vmem [resolvable:$true] %s24
      %27 = dma.hbm_to_vmem [thread:$0]  %s1, 128, %s25, [#allocation3]
    $region9: #{tpu_custom_call.1} parent=1 // pred_fallthru
      _
    // Predicated region
    $region10: #{tpu_custom_call.1} parent=1 // pred_check
      _
    $region11: #{tpu_custom_call.1} parent=1 // pred_check_branch
      %29 = sbr.rel (0) target = $region13
    $region12: #{tpu_custom_call.1} parent=1 // pred_region
      %30 = dma.done [#allocation5], 128
    $region13: #{tpu_custom_call.1} parent=1 // pred_fallthru
      _
    // Predicated region
    $region14: #{tpu_custom_call.1} parent=1 // pred_check
      _
    $region15: #{tpu_custom_call.1} parent=1 // pred_check_branch
      %32 = sbr.rel (0) target = $region17
    $region16: #{tpu_custom_call.1} parent=1 // pred_region
      %33 = dma.done [#allocation3], 128
    $region17: #{tpu_custom_call.1} parent=1 // pred_fallthru
      _
    %34 = sfence
    %s35 = sld [smem:[#allocation2]]
    %v36 = vld [vmem:[#allocation6] sm:$0x1]
    %v37 = vstv %s35
    %v38 = vmul.f32 %v37, %v36
    %s39 = sld [smem:[#allocation2 + $0x1]]
    %v40 = vld [vmem:[#allocation6 + $0x1] sm:$0x1]
    %v41 = vstv %s39
    %v42 = vmul.f32 %v41, %v40
    %v43 = vadd.f32 %v38, %v42
    %s44 = sld [smem:[#allocation2 + $0x2]]
    %v45 = vld [vmem:[#allocation6 + $0x2] sm:$0x1]
    %v46 = vstv %s44
    %v47 = vmul.f32 %v46, %v45
    %v48 = vadd.f32 %v43, %v47
    %s49 = sld [smem:[#allocation2 + $0x3]]
    %v50 = vld [vmem:[#allocation6 + $0x3] sm:$0x1]
    %v51 = vstv %s49
    %v52 = vmul.f32 %v51, %v50
    %v53 = vadd.f32 %v48, %v52
    %s54 = sld [smem:[#allocation2 + $0x4]]
    %v55 = vld [vmem:[#allocation6 + $0x4] sm:$0x1]
    %v56 = vstv %s54
    %v57 = vmul.f32 %v56, %v55
    %v58 = vadd.f32 %v53, %v57
    %s59 = sld [smem:[#allocation2 + $0x5]]
    %v60 = vld [vmem:[#allocation6 + $0x5] sm:$0x1]
    %v61 = vstv %s59
    %v62 = vmul.f32 %v61, %v60
    %v63 = vadd.f32 %v58, %v62
    %vm64 = vcmask 57344
    %65 = vst.msk [vmem:[#allocation7] sm:$0x1] %vm64, %v63
    %s66 = sld [smem:[#allocation2 + $0x80]]
    %v67 = vld [vmem:[#allocation6] sm:$0x1]
    %v68 = vstv %s66
    %v69 = vmul.f32 %v68, %v67
    %s70 = sld [smem:[#allocation2 + $0x81]]
    %v71 = vld [vmem:[#allocation6 + $0x1] sm:$0x1]
    %v72 = vstv %s70
    %v73 = vmul.f32 %v72, %v71
    %v74 = vadd.f32 %v69, %v73
    %s75 = sld [smem:[#allocation2 + $0x82]]
    %v76 = vld [vmem:[#allocation6 + $0x2] sm:$0x1]
    %v77 = vstv %s75
    %v78 = vmul.f32 %v77, %v76
    %v79 = vadd.f32 %v74, %v78
    %s80 = sld [smem:[#allocation2 + $0x83]]
    %v81 = vld [vmem:[#allocation6 + $0x3] sm:$0x1]
    %v82 = vstv %s80
    %v83 = vmul.f32 %v82, %v81
    %v84 = vadd.f32 %v79, %v83
    %s85 = sld [smem:[#allocation2 + $0x84]]
    %v86 = vld [vmem:[#allocation6 + $0x4] sm:$0x1]
    %v87 = vstv %s85
    %v88 = vmul.f32 %v87, %v86
    %v89 = vadd.f32 %v84, %v88
    %s90 = sld [smem:[#allocation2 + $0x85]]
    %v91 = vld [vmem:[#allocation6 + $0x5] sm:$0x1]
    %v92 = vstv %s90
    %v93 = vmul.f32 %v92, %v91
    %v94 = vadd.f32 %v89, %v93
    %95 = vst.msk [vmem:[#allocation7 + $0x1] sm:$0x1] %vm64, %v94
    %s96 = sld [smem:[#allocation2 + $0x100]]
    %v97 = vld [vmem:[#allocation6] sm:$0x1]
    %v98 = vstv %s96
    %v99 = vmul.f32 %v98, %v97
    %s100 = sld [smem:[#allocation2 + $0x101]]
    %v101 = vld [vmem:[#allocation6 + $0x1] sm:$0x1]
    %v102 = vstv %s100
    %v103 = vmul.f32 %v102, %v101
    %v104 = vadd.f32 %v99, %v103
    %s105 = sld [smem:[#allocation2 + $0x102]]
    %v106 = vld [vmem:[#allocation6 + $0x2] sm:$0x1]
    %v107 = vstv %s105
    %v108 = vmul.f32 %v107, %v106
    %v109 = vadd.f32 %v104, %v108
    %s110 = sld [smem:[#allocation2 + $0x103]]
    %v111 = vld [vmem:[#allocation6 + $0x3] sm:$0x1]
    %v112 = vstv %s110
    %v113 = vmul.f32 %v112, %v111
    %v114 = vadd.f32 %v109, %v113
    %s115 = sld [smem:[#allocation2 + $0x104]]
    %v116 = vld [vmem:[#allocation6 + $0x4] sm:$0x1]
    %v117 = vstv %s115
    %v118 = vmul.f32 %v117, %v116
    %v119 = vadd.f32 %v114, %v118
    %s120 = sld [smem:[#allocation2 + $0x105]]
    %v121 = vld [vmem:[#allocation6 + $0x5] sm:$0x1]
    %v122 = vstv %s120
    %v123 = vmul.f32 %v122, %v121
    %v124 = vadd.f32 %v119, %v123
    %125 = vst.msk [vmem:[#allocation7 + $0x2] sm:$0x1] %vm64, %v124
    %s126 = sld [smem:[#allocation2 + $0x180]]
    %v127 = vld [vmem:[#allocation6] sm:$0x1]
    %v128 = vstv %s126
    %v129 = vmul.f32 %v128, %v127
    %s130 = sld [smem:[#allocation2 + $0x181]]
    %v131 = vld [vmem:[#allocation6 + $0x1] sm:$0x1]
    %v132 = vstv %s130
    %v133 = vmul.f32 %v132, %v131
    %v134 = vadd.f32 %v129, %v133
    %s135 = sld [smem:[#allocation2 + $0x182]]
    %v136 = vld [vmem:[#allocation6 + $0x2] sm:$0x1]
    %v137 = vstv %s135
    %v138 = vmul.f32 %v137, %v136
    %v139 = vadd.f32 %v134, %v138
    %s140 = sld [smem:[#allocation2 + $0x183]]
    %v141 = vld [vmem:[#allocation6 + $0x3] sm:$0x1]
    %v142 = vstv %s140
    %v143 = vmul.f32 %v142, %v141
    %v144 = vadd.f32 %v139, %v143
    %s145 = sld [smem:[#allocation2 + $0x184]]
    %v146 = vld [vmem:[#allocation6 + $0x4] sm:$0x1]
    %v147 = vstv %s145
    %v148 = vmul.f32 %v147, %v146
    %v149 = vadd.f32 %v144, %v148
    %s150 = sld [smem:[#allocation2 + $0x185]]
    %v151 = vld [vmem:[#allocation6 + $0x5] sm:$0x1]
    %v152 = vstv %s150
    %v153 = vmul.f32 %v152, %v151
    %v154 = vadd.f32 %v149, %v153
    %155 = vst.msk [vmem:[#allocation7 + $0x3] sm:$0x1] %vm64, %v154
    %s156 = sld [smem:[#allocation2 + $0x200]]
    %v157 = vld [vmem:[#allocation6] sm:$0x1]
    %v158 = vstv %s156
    %v159 = vmul.f32 %v158, %v157
    %s160 = sld [smem:[#allocation2 + $0x201]]
    %v161 = vld [vmem:[#allocation6 + $0x1] sm:$0x1]
    %v162 = vstv %s160
    %v163 = vmul.f32 %v162, %v161
    %v164 = vadd.f32 %v159, %v163
    %s165 = sld [smem:[#allocation2 + $0x202]]
    %v166 = vld [vmem:[#allocation6 + $0x2] sm:$0x1]
    %v167 = vstv %s165
    %v168 = vmul.f32 %v167, %v166
    %v169 = vadd.f32 %v164, %v168
    %s170 = sld [smem:[#allocation2 + $0x203]]
    %v171 = vld [vmem:[#allocation6 + $0x3] sm:$0x1]
    %v172 = vstv %s170
    %v173 = vmul.f32 %v172, %v171
    %v174 = vadd.f32 %v169, %v173
    %s175 = sld [smem:[#allocation2 + $0x204]]
    %v176 = vld [vmem:[#allocation6 + $0x4] sm:$0x1]
    %v177 = vstv %s175
    %v178 = vmul.f32 %v177, %v176
    %v179 = vadd.f32 %v174, %v178
    %s180 = sld [smem:[#allocation2 + $0x205]]
    %v181 = vld [vmem:[#allocation6 + $0x5] sm:$0x1]
    %v182 = vstv %s180
    %v183 = vmul.f32 %v182, %v181
    %v184 = vadd.f32 %v179, %v183
    %185 = vst.msk [vmem:[#allocation7 + $0x4] sm:$0x1] %vm64, %v184
    %s186 = sld [smem:[#allocation2 + $0x280]]
    %v187 = vld [vmem:[#allocation6] sm:$0x1]
    %v188 = vstv %s186
    %v189 = vmul.f32 %v188, %v187
    %s190 = sld [smem:[#allocation2 + $0x281]]
    %v191 = vld [vmem:[#allocation6 + $0x1] sm:$0x1]
    %v192 = vstv %s190
    %v193 = vmul.f32 %v192, %v191
    %v194 = vadd.f32 %v189, %v193
    %s195 = sld [smem:[#allocation2 + $0x282]]
    %v196 = vld [vmem:[#allocation6 + $0x2] sm:$0x1]
    %v197 = vstv %s195
    %v198 = vmul.f32 %v197, %v196
    %v199 = vadd.f32 %v194, %v198
    %s200 = sld [smem:[#allocation2 + $0x283]]
    %v201 = vld [vmem:[#allocation6 + $0x3] sm:$0x1]
    %v202 = vstv %s200
    %v203 = vmul.f32 %v202, %v201
    %v204 = vadd.f32 %v199, %v203
    %s205 = sld [smem:[#allocation2 + $0x284]]
    %v206 = vld [vmem:[#allocation6 + $0x4] sm:$0x1]
    %v207 = vstv %s205
    %v208 = vmul.f32 %v207, %v206
    %v209 = vadd.f32 %v204, %v208
    %s210 = sld [smem:[#allocation2 + $0x285]]
    %v211 = vld [vmem:[#allocation6 + $0x5] sm:$0x1]
    %v212 = vstv %s210
    %v213 = vmul.f32 %v212, %v211
    %v214 = vadd.f32 %v209, %v213
    %215 = vst.msk [vmem:[#allocation7 + $0x5] sm:$0x1] %vm64, %v214
    // Predicated region
    $region18: #{tpu_custom_call.1} parent=1 // pred_check
      _
    $region19: #{tpu_custom_call.1} parent=1 // pred_check_branch
      %217 = sbr.rel (0) target = $region21
    $region20: #{tpu_custom_call.1} parent=1 // pred_region
      %s219 = ssub.s32 128, 128
      %220 = vsyncadd [#allocation4], %s219
      %s222 = sshll.u32 [#allocation7], 4
      %s223 = int_to_ptr.vmem [resolvable:$true] %s222
      %225 = dma.vmem_to_hbm [thread:$0]  %s223, 128, %s2, [#allocation4]
    $region21: #{tpu_custom_call.1} parent=1 // pred_fallthru
      _
    // Predicated region
    $region22: #{tpu_custom_call.1} parent=1 // pred_check
      _
    $region23: #{tpu_custom_call.1} parent=1 // pred_check_branch
      %227 = sbr.rel (0) target = $region25
    $region24: #{tpu_custom_call.1} parent=1 // pred_region
      %228 = dma.done [#allocation4], 128
    $region25: #{tpu_custom_call.1} parent=1 // pred_fallthru
      _
    %229 = vsyncpa [#allocation3], 1
    %230 = vsyncpa [#allocation4], 1
    %231 = vsyncpa [#allocation5], 1

</llo_original>
